<compile_context>
chip_gen: v7x
topology: tpu7x:2x2x1
jax: 0.10.0
libtpu: 0.0.40
codegen_flags: <defaults>
</compile_context>

<pallas_src>
import jax
import jax.numpy as jnp
from jax.experimental import pallas as pl
from jax.experimental.pallas import tpu as pltpu


# ------------------------------ fused kernel --------------------------------

def _attn_fused_kernel(ec_rows_ref, ec_slab_ref, wi_rep_ref, wj_bd_ref,
                       v_blk_ref, expand_ref, out_ref):
    G, Ld = ec_slab_ref.shape            # groups (b,s) in this block, L*d
    L = expand_ref.shape[0]

    # (1) Projections on the MXU, emitted directly in the layouts the pairwise
    #     stage needs:
    #       a_t[(g,i), j*d+dd]      = (Wi Ec[g,i])[dd]   (Wi^T tiled over j)
    #       ec_wj_slab[g, j*d+dd]   = (Wj Ec[g,j])[dd]   (block-diag Wj^T)
    a_t = jnp.dot(ec_rows_ref[...], wi_rep_ref[...],
                  preferred_element_type=jnp.float32)          # (G*L, L*d)
    ec_wj_slab = jnp.dot(ec_slab_ref[...], wj_bd_ref[...],
                         preferred_element_type=jnp.float32)   # (G, L*d)

    # (2) Pairwise add + tanh, lane-dense (last dim = L*d = 128).
    t = jnp.tanh(a_t.reshape(G, L, Ld) + ec_wj_slab[:, None, :])   # (G, L, L*d)

    # (3) V-weighted reduction over d via the MXU (block-diagonal V):
    #     scores[(g,i), j] = sum_dd V[dd] * t[g, i, j*d+dd]
    scores = jnp.dot(t.reshape(G * L, Ld), v_blk_ref[...],
                     preferred_element_type=jnp.float32)       # (G*L, L)
    s3 = scores.reshape(G, L, L)

    # (4) Softmax over the pair axis j + row-sum (== 1 up to fp rounding; the
    #     full forward is computed, not short-circuited).  Kept in f32.
    m = jnp.max(s3, axis=-1, keepdims=True)
    e = jnp.exp(s3 - m)
    alpha = e / jnp.sum(e, axis=-1, keepdims=True)
    rowsum = jnp.sum(alpha, axis=-1)                           # (G, L)

    # (5) Spread each row-sum over its d lanes via the MXU expansion matrix
    #     and scale Ec; single unmasked lane-dense store.
    r_exp = jnp.dot(rowsum, expand_ref[...],
                    preferred_element_type=jnp.float32)        # (G, L*d)
    out_ref[...] = (ec_slab_ref[...] * r_exp).astype(out_ref.dtype)


# -------------------------------- wrapper ------------------------------------

def _pick_group_block(bs):
    # Everything fits in VMEM in one step at demo size.  For larger inputs use
    # sublane-aligned (multiple-of-8) group blocks so the BlockSpec pipeline
    # overlaps HBM DMA with compute and the "parallel" axis can be sharded
    # across v7x's two TensorCores.
    if bs % 16 != 0:
        return bs
    blk = max(8, min(64, bs // 2))
    while bs % blk != 0:
        blk //= 2
    return blk


def attn_net_forward(Ec, Wi, Wj, Vw):
    """AttnNet.forward: Ec (B, S, L, d) -> attn (B, S, 1, L*d)."""
    B, S, L, d = Ec.shape
    BS, Ld = B * S, L * d
    f32 = jnp.float32
    Ec = Ec.astype(f32)

    # Host-side prep: two free reshaped views of Ec + small constant operands
    # (one-time weight prep; at very large L*d the kron'd Wj block-diagonal
    # should be replaced by a row-layout Wj matmul or a j-axis tiled grid).
    ec_rows = Ec.reshape(BS * L, d)          # rows in (b, s, l) order
    ec_slab = Ec.reshape(BS, Ld)             # lane-dense slab; also output layout
    eye_L = jnp.eye(L, dtype=f32)
    wi_rep = jnp.tile(Wi.T.astype(f32), (1, L))                     # (d, L*d)
    wj_bd = jnp.kron(eye_L, Wj.T.astype(f32))                       # (L*d, L*d)
    v_blk = jnp.kron(eye_L, Vw.astype(f32).reshape(d, 1))           # (L*d, L)
    expand = jnp.kron(eye_L, jnp.ones((1, d), dtype=f32))           # (L, L*d)

    g_blk = _pick_group_block(BS)
    grid = (BS // g_blk,)

    out_slab = pl.pallas_call(
        _attn_fused_kernel,
        out_shape=jax.ShapeDtypeStruct((BS, Ld), f32),
        grid=grid,
        in_specs=[
            pl.BlockSpec((g_blk * L, d), lambda i: (i, 0)),   # Ec, row view
            pl.BlockSpec((g_blk, Ld), lambda i: (i, 0)),      # Ec, slab view
            pl.BlockSpec((d, Ld), lambda i: (0, 0)),          # tiled Wi^T
            pl.BlockSpec((Ld, Ld), lambda i: (0, 0)),         # block-diag Wj^T
            pl.BlockSpec((Ld, L), lambda i: (0, 0)),          # block-diag V
            pl.BlockSpec((L, Ld), lambda i: (0, 0)),          # row-sum expander
        ],
        out_specs=pl.BlockSpec((g_blk, Ld), lambda i: (i, 0)),
        compiler_params=pltpu.CompilerParams(
            dimension_semantics=("parallel",)),
    )(ec_rows, ec_slab, wi_rep, wj_bd, v_blk, expand)

    return out_slab.reshape(B, S, 1, Ld)


# ----------------------------- pure-JAX reference ----------------------------

def reference_forward(Ec, Wi, Wj, Vw):
    """Literal transcription of the PyTorch forward (for correctness check)."""
    B, S, L, d = Ec.shape
    hi = jax.lax.Precision.HIGHEST
    ec_wi = jnp.einsum("bsld,ed->bsle", Ec, Wi, precision=hi)
    ec_wj = jnp.einsum("bsld,ed->bsle", Ec, Wj, precision=hi)
    a = jnp.swapaxes(jnp.swapaxes(ec_wi[:, :, :, None, :], 1, 2), 2, 3).reshape(L, 1, -1)
    b = jnp.swapaxes(ec_wj, 1, 2).reshape(L, -1)
    ec_add = (a + b).reshape(-1, L, L, S, d)
    ec_add = jnp.swapaxes(ec_add, 2, 3)
    ec_add = jnp.swapaxes(ec_add, 1, 2)              # (B, S, L, L, d)
    w = jnp.tanh(ec_add)
    Sc = jnp.einsum("bsijd,od->bsijo", w, Vw, precision=hi)   # (B, S, L, L, 1)
    alpha = jax.nn.softmax(Sc, axis=-2)
    attn_i = alpha * Ec[:, :, :, None, :]
    attn = attn_i.sum(axis=-2)
    return attn.reshape(-1, S, 1, L * d)


if __name__ == "__main__":
    B, S, L, d = 2, 4, 8, 16
    key = jax.random.PRNGKey(0)
    k1, k2, k3, k4 = jax.random.split(key, 4)
    scale = 1.0 / (d ** 0.5)
    Wi = jax.random.normal(k1, (d, d), dtype=jnp.float32) * scale
    Wj = jax.random.normal(k2, (d, d), dtype=jnp.float32) * scale
    Vw = jax.random.normal(k3, (1, d), dtype=jnp.float32) * scale
    Ec = jax.random.normal(k4, (B, S, L, d), dtype=jnp.float32)

    out = attn_net_forward(Ec, Wi, Wj, Vw)
    out = jax.block_until_ready(out)

    ref = reference_forward(Ec, Wi, Wj, Vw)
    assert out.shape == (B, S, 1, L * d), out.shape
    assert jnp.allclose(out, ref, atol=1e-3, rtol=1e-3), float(jnp.max(jnp.abs(out - ref)))
    print("KERNEL_OK")
</pallas_src>

<mosaic_0001>
module attributes {stable_mosaic.version = 11 : i64} {
  func.func @_attn_fused_kernel(%arg0: i32, %arg1: memref<64x16xf32, #tpu.memory_space<vmem>>, %arg2: memref<8x128xf32, #tpu.memory_space<vmem>>, %arg3: memref<16x128xf32, #tpu.memory_space<vmem>>, %arg4: memref<128x128xf32, #tpu.memory_space<vmem>>, %arg5: memref<128x8xf32, #tpu.memory_space<vmem>>, %arg6: memref<8x128xf32, #tpu.memory_space<vmem>>, %arg7: memref<8x128xf32, #tpu.memory_space<vmem>>) attributes {dimension_semantics = [#tpu.dimension_semantics<parallel>], iteration_bounds = array<i64: 1>, scalar_prefetch = 0 : i64, scratch_operands = 0 : i64, tpu.core_type = #tpu.core_type<tc>, window_params = [{transform_indices = @transform_0, window_bounds = array<i64: 64, 16>}, {transform_indices = @transform_1, window_bounds = array<i64: 8, 128>}, {pipeline_mode = #tpu.pipeline_mode<synchronous>, transform_indices = @transform_2, window_bounds = array<i64: 16, 128>}, {pipeline_mode = #tpu.pipeline_mode<synchronous>, transform_indices = @transform_3, window_bounds = array<i64: 128, 128>}, {pipeline_mode = #tpu.pipeline_mode<synchronous>, transform_indices = @transform_4, window_bounds = array<i64: 128, 8>}, {pipeline_mode = #tpu.pipeline_mode<synchronous>, transform_indices = @transform_5, window_bounds = array<i64: 8, 128>}, {transform_indices = @transform_6, window_bounds = array<i64: 8, 128>}]} {
    %c0 = arith.constant 0 : index
    %c0_0 = arith.constant 0 : index
    %0 = vector.load %arg1[%c0, %c0_0] : memref<64x16xf32, #tpu.memory_space<vmem>>, vector<64x16xf32>
    %c0_1 = arith.constant 0 : index
    %c0_2 = arith.constant 0 : index
    %1 = vector.load %arg3[%c0_1, %c0_2] : memref<16x128xf32, #tpu.memory_space<vmem>>, vector<16x128xf32>
    %cst = arith.constant dense<0.000000e+00> : vector<64x128xf32>
    %2 = tpu.matmul %0, %1, %cst {dimension_numbers = #tpu.dot_dimension_numbers<[1], [0], [0], [1], [0, 0, 1, 1], [], []>} : vector<64x16xf32>, vector<16x128xf32>, vector<64x128xf32> -> vector<64x128xf32>
    %c0_3 = arith.constant 0 : index
    %c0_4 = arith.constant 0 : index
    %3 = vector.load %arg2[%c0_3, %c0_4] : memref<8x128xf32, #tpu.memory_space<vmem>>, vector<8x128xf32>
    %c0_5 = arith.constant 0 : index
    %c0_6 = arith.constant 0 : index
    %4 = vector.load %arg4[%c0_5, %c0_6] : memref<128x128xf32, #tpu.memory_space<vmem>>, vector<128x128xf32>
    %cst_7 = arith.constant dense<0.000000e+00> : vector<8x128xf32>
    %5 = tpu.matmul %3, %4, %cst_7 {dimension_numbers = #tpu.dot_dimension_numbers<[1], [0], [0], [1], [0, 0, 1, 1], [], []>} : vector<8x128xf32>, vector<128x128xf32>, vector<8x128xf32> -> vector<8x128xf32>
    %6 = vector.shape_cast %2 : vector<64x128xf32> to vector<8x8x128xf32>
    %7 = vector.shape_cast %5 : vector<8x128xf32> to vector<8x1x128xf32>
    %8 = vector.broadcast %7 : vector<8x1x128xf32> to vector<8x8x128xf32>
    %9 = arith.addf %6, %8 : vector<8x8x128xf32>
    %10 = math.tanh %9 : vector<8x8x128xf32>
    %11 = vector.shape_cast %10 : vector<8x8x128xf32> to vector<64x128xf32>
    %c0_8 = arith.constant 0 : index
    %c0_9 = arith.constant 0 : index
    %12 = vector.load %arg5[%c0_8, %c0_9] : memref<128x8xf32, #tpu.memory_space<vmem>>, vector<128x8xf32>
    %cst_10 = arith.constant dense<0.000000e+00> : vector<64x8xf32>
    %13 = tpu.matmul %11, %12, %cst_10 {dimension_numbers = #tpu.dot_dimension_numbers<[1], [0], [0], [1], [0, 0, 1, 1], [], []>} : vector<64x128xf32>, vector<128x8xf32>, vector<64x8xf32> -> vector<64x8xf32>
    %14 = vector.shape_cast %13 : vector<64x8xf32> to vector<8x8x8xf32>
    %cst_11 = arith.constant dense<0xFF800000> : vector<8x8xf32>
    %15 = vector.multi_reduction <maximumf>, %14, %cst_11 [2] : vector<8x8x8xf32> to vector<8x8xf32>
    %16 = vector.shape_cast %15 : vector<8x8xf32> to vector<8x8x1xf32>
    %17 = vector.broadcast %16 : vector<8x8x1xf32> to vector<8x8x8xf32>
    %18 = arith.subf %14, %17 : vector<8x8x8xf32>
    %19 = math.exp %18 : vector<8x8x8xf32>
    %cst_12 = arith.constant dense<0.000000e+00> : vector<8x8xf32>
    %20 = vector.multi_reduction <add>, %19, %cst_12 [2] : vector<8x8x8xf32> to vector<8x8xf32>
    %21 = vector.shape_cast %20 : vector<8x8xf32> to vector<8x8x1xf32>
    %22 = vector.broadcast %21 : vector<8x8x1xf32> to vector<8x8x8xf32>
    %23 = arith.divf %19, %22 : vector<8x8x8xf32>
    %cst_13 = arith.constant dense<0.000000e+00> : vector<8x8xf32>
    %24 = vector.multi_reduction <add>, %23, %cst_13 [2] : vector<8x8x8xf32> to vector<8x8xf32>
    %c0_14 = arith.constant 0 : index
    %c0_15 = arith.constant 0 : index
    %25 = vector.load %arg6[%c0_14, %c0_15] : memref<8x128xf32, #tpu.memory_space<vmem>>, vector<8x128xf32>
    %cst_16 = arith.constant dense<0.000000e+00> : vector<8x128xf32>
    %26 = tpu.matmul %24, %25, %cst_16 {dimension_numbers = #tpu.dot_dimension_numbers<[1], [0], [0], [1], [0, 0, 1, 1], [], []>} : vector<8x8xf32>, vector<8x128xf32>, vector<8x128xf32> -> vector<8x128xf32>
    %c0_17 = arith.constant 0 : index
    %c0_18 = arith.constant 0 : index
    %27 = vector.load %arg2[%c0_17, %c0_18] : memref<8x128xf32, #tpu.memory_space<vmem>>, vector<8x128xf32>
    %28 = arith.mulf %27, %26 : vector<8x128xf32>
    %c0_19 = arith.constant 0 : index
    %c0_20 = arith.constant 0 : index
    %29 = vector.load %arg7[%c0_19, %c0_20] : memref<8x128xf32, #tpu.memory_space<vmem>>, vector<8x128xf32>
    tpu.vector_store %arg7[%c0_19, %c0_20], %28 {strides = array<i32>} : memref<8x128xf32, #tpu.memory_space<vmem>>, vector<8x128xf32>,
    return
  }
  func.func @transform_0(%arg0: i32) -> (i32, i32) {
    %c0_i32 = arith.constant 0 : i32
    %c0_i32_0 = arith.constant 0 : i32
    return %arg0, %c0_i32 : i32, i32
  }
  func.func @transform_1(%arg0: i32) -> (i32, i32) {
    %c0_i32 = arith.constant 0 : i32
    %c0_i32_0 = arith.constant 0 : i32
    return %arg0, %c0_i32 : i32, i32
  }
  func.func @transform_2(%arg0: i32) -> (i32, i32) {
    %c0_i32 = arith.constant 0 : i32
    %c0_i32_0 = arith.constant 0 : i32
    %c0_i32_1 = arith.constant 0 : i32
    return %c0_i32, %c0_i32_0 : i32, i32
  }
  func.func @transform_3(%arg0: i32) -> (i32, i32) {
    %c0_i32 = arith.constant 0 : i32
    %c0_i32_0 = arith.constant 0 : i32
    %c0_i32_1 = arith.constant 0 : i32
    return %c0_i32, %c0_i32_0 : i32, i32
  }
  func.func @transform_4(%arg0: i32) -> (i32, i32) {
    %c0_i32 = arith.constant 0 : i32
    %c0_i32_0 = arith.constant 0 : i32
    %c0_i32_1 = arith.constant 0 : i32
    return %c0_i32, %c0_i32_0 : i32, i32
  }
  func.func @transform_5(%arg0: i32) -> (i32, i32) {
    %c0_i32 = arith.constant 0 : i32
    %c0_i32_0 = arith.constant 0 : i32
    %c0_i32_1 = arith.constant 0 : i32
    return %c0_i32, %c0_i32_0 : i32, i32
  }
  func.func @transform_6(%arg0: i32) -> (i32, i32) {
    %c0_i32 = arith.constant 0 : i32
    %c0_i32_0 = arith.constant 0 : i32
    return %arg0, %c0_i32 : i32, i32
  }
}

</mosaic_0001>

<llo_original>
// kernel: tpu_custom_call.1
$region0: #{tpu_custom_call.1}
  #allocation0 [shape = 'u32[]', space=smem, size = 0x4, offset = 0x4, fixed_abs, tag = 'smem constant byte address 0x4 - core index']
  #allocation1 [shape = 'u32[144,128]{1,0:T(1,128)}', space=vmem, size = 0x12000, scoped, tag = 'internal scratch']
  %s0 = inlined_call_operand.vmem [shape: f32[64,16], index: 0, kind: input, shape index: {}]
  %s1 = inlined_call_operand.vmem [shape: f32[8,128], index: 1, kind: input, shape index: {}]
  %s2 = inlined_call_operand.vmem [shape: f32[16,128], index: 2, kind: input, shape index: {}]
  %s3 = inlined_call_operand.vmem [shape: f32[128,128], index: 3, kind: input, shape index: {}]
  %s4 = inlined_call_operand.vmem [shape: f32[128,8], index: 4, kind: input, shape index: {}]
  %s5 = inlined_call_operand.vmem [shape: f32[8,128], index: 5, kind: input, shape index: {}]
  %s6 = inlined_call_operand.hbm [shape: f32[8,128], index: 6, kind: output, shape index: {}]
  %s7 = sld [smem:[#allocation0]]
  $region34: #{tpu_custom_call.1} parent=0
    _
  %s9 = ssub.s32 1, %s7
  %s10 = scalar_select 0, %s9, %s7
  $region1: #{tpu_custom_call.1} parent=0
    #allocation2 [shape = 'u8[4096]{0}', space=vmem, size = 0x1000, scoped, tag = 'output window, operand 0, single buffered']
    #allocation3 [shape = 's32[1]{0}', space=sflag, size = 0x4, scoped, tag = 'scoped memory for tpu_custom_call.1']
    %11 = vsyncpa [#allocation3], 0
    // Predicated region
    $region2: #{tpu_custom_call.1} parent=1 // pred_check
      _
    $region3: #{tpu_custom_call.1} parent=1 // pred_check_branch
      %13 = sbr.rel (0) target = $region5
    $region4: #{tpu_custom_call.1} parent=1 // pred_region
      _
    $region5: #{tpu_custom_call.1} parent=1 // pred_fallthru
      _
    // Predicated region
    $region6: #{tpu_custom_call.1} parent=1 // pred_check
      _
    $region7: #{tpu_custom_call.1} parent=1 // pred_check_branch
      %15 = sbr.rel (0) target = $region9
    $region8: #{tpu_custom_call.1} parent=1 // pred_region
      _
    $region9: #{tpu_custom_call.1} parent=1 // pred_fallthru
      _
    // Predicated region
    $region10: #{tpu_custom_call.1} parent=1 // pred_check
      _
    $region11: #{tpu_custom_call.1} parent=1 // pred_check_branch
      %17 = sbr.rel (0) target = $region13
    $region12: #{tpu_custom_call.1} parent=1 // pred_region
      _
    $region13: #{tpu_custom_call.1} parent=1 // pred_fallthru
      _
    // Predicated region
    $region14: #{tpu_custom_call.1} parent=1 // pred_check
      _
    $region15: #{tpu_custom_call.1} parent=1 // pred_check_branch
      %19 = sbr.rel (0) target = $region17
    $region16: #{tpu_custom_call.1} parent=1 // pred_region
      _
    $region17: #{tpu_custom_call.1} parent=1 // pred_fallthru
      _
    // Predicated region
    $region18: #{tpu_custom_call.1} parent=1 // pred_check
      _
    $region19: #{tpu_custom_call.1} parent=1 // pred_check_branch
      %21 = sbr.rel (0) target = $region21
    $region20: #{tpu_custom_call.1} parent=1 // pred_region
      _
    $region21: #{tpu_custom_call.1} parent=1 // pred_fallthru
      _
    // Predicated region
    $region22: #{tpu_custom_call.1} parent=1 // pred_check
      _
    $region23: #{tpu_custom_call.1} parent=1 // pred_check_branch
      %23 = sbr.rel (0) target = $region25
    $region24: #{tpu_custom_call.1} parent=1 // pred_region
      _
    $region25: #{tpu_custom_call.1} parent=1 // pred_fallthru
      _
    %v24 = vld [vmem:[%s0] sm:$0xff]
    %v25 = vld [vmem:[%s0 + $0x8] sm:$0xff]
    %v26 = vld [vmem:[%s0 + $0x10] sm:$0xff]
    %v27 = vld [vmem:[%s0 + $0x18] sm:$0xff]
    %v28 = vld [vmem:[%s0 + $0x20] sm:$0xff]
    %v29 = vld [vmem:[%s0 + $0x28] sm:$0xff]
    %v30 = vld [vmem:[%s0 + $0x30] sm:$0xff]
    %v31 = vld [vmem:[%s0 + $0x38] sm:$0xff]
    %v32 = vld [vmem:[%s2] sm:$0xff]
    %v33 = vld [vmem:[%s2 + $0x8] sm:$0xff]
    %vm34 = vcmask 130048
    %v36 = vsel %vm34, %v24, 0
    %v39 = vsel %vm34, %v25, 0
    %v42 = vsel %vm34, %v26, 0
    %v45 = vsel %vm34, %v27, 0
    %v48 = vsel %vm34, %v28, 0
    %v51 = vsel %vm34, %v29, 0
    %v54 = vsel %vm34, %v30, 0
    %v57 = vsel %vm34, %v31, 0
    %59 = vmatprep.subr.mxu0 0.0
    %60 = vmatpush1.msra.mxu0 %v32
    %61 = vmatprep.subr.mxu0 0.0
    %62 = vmatpush1.msra.mxu0 %v33
    %63 = vmatprep.subr.mxu0 0.0
    %64 = vmatpush1.msra.mxu0 0.0
    %65 = vmatprep.subr.mxu0 0.0
    %66 = vmatpush1.msra.mxu0 0.0
    %67 = vmatprep.subr.mxu0 0.0
    %68 = vmatpush1.msra.mxu0 0.0
    %69 = vmatprep.subr.mxu0 0.0
    %70 = vmatpush1.msra.mxu0 0.0
    %71 = vmatprep.subr.mxu0 0.0
    %72 = vmatpush1.msra.mxu0 0.0
    %73 = vmatprep.subr.mxu0 0.0
    %74 = vmatpush1.msra.mxu0 0.0
    %75 = vmatprep.subr.mxu0 0.0
    %76 = vmatpush1.msra.mxu0 0.0
    %77 = vmatprep.subr.mxu0 0.0
    %78 = vmatpush1.msra.mxu0 0.0
    %79 = vmatprep.subr.mxu0 0.0
    %80 = vmatpush1.msra.mxu0 0.0
    %81 = vmatprep.subr.mxu0 0.0
    %82 = vmatpush1.msra.mxu0 0.0
    %83 = vmatprep.subr.mxu0 0.0
    %84 = vmatpush1.msra.mxu0 0.0
    %85 = vmatprep.subr.mxu0 0.0
    %86 = vmatpush1.msra.mxu0 0.0
    %87 = vmatprep.subr.mxu0 0.0
    %88 = vmatpush1.msra.mxu0 0.0
    %89 = vmatprep.subr.mxu0 0.0
    %90 = vmatpush1.msra.mxu0 0.0
    %91 = vmatprep.subr.mxu0 0.0
    %92 = vmatpush1.msra.mxu0 0.0
    %93 = vmatprep.subr.mxu0 0.0
    %94 = vmatpush1.msra.mxu0 0.0
    %95 = vmatprep.subr.mxu0 0.0
    %96 = vmatpush1.msra.mxu0 0.0
    %97 = vmatprep.subr.mxu0 0.0
    %98 = vmatpush1.msra.mxu0 0.0
    %99 = vmatprep.subr.mxu0 0.0
    %100 = vmatpush1.msra.mxu0 0.0
    %101 = vmatprep.subr.mxu0 0.0
    %102 = vmatpush1.msra.mxu0 0.0
    %103 = vmatprep.subr.mxu0 0.0
    %104 = vmatpush1.msra.mxu0 0.0
    %105 = vmatprep.subr.mxu0 0.0
    %106 = vmatpush1.msra.mxu0 0.0
    %107 = vmatprep.subr.mxu0 0.0
    %108 = vmatpush1.msra.mxu0 0.0
    %109 = vmatprep.subr.mxu0 0.0
    %110 = vmatpush1.msra.mxu0 0.0
    %111 = vmatprep.subr.mxu0 0.0
    %112 = vmatpush1.msra.mxu0 0.0
    %113 = vmatprep.subr.mxu0 0.0
    %114 = vmatpush1.msra.mxu0 0.0
    %115 = vmatprep.subr.mxu0 0.0
    %116 = vmatpush1.msra.mxu0 0.0
    %117 = vmatprep.subr.mxu0 0.0
    %118 = vmatpush1.msra.mxu0 0.0
    %119 = vmatprep.subr.mxu0 0.0
    %120 = vmatpush1.msra.mxu0 0.0
    %121 = vmatprep.subr.mxu0 0.0
    %122 = vmatpush1.msra.mxu0 0.0
    %123 = vmatprep.mubr.f32.mxu0 0.0
    %124 = vmatmul.mubr.f32.gmra.mrb[0].mxu0 %v36
    %v125 = vpop.f32.mrb[0].mxu0
    %v126 = vadd.f32 0.0, %v125
    %v127 = vpop.f32.mrb[0].mxu0
    %128 = vmatprep.mubr.f32.mxu0 0.0
    %129 = vmatmul.mubr.f32.gmra.mrb[0].mxu0 %v39
    %v130 = vpop.f32.mrb[0].mxu0
    %v131 = vadd.f32 0.0, %v130
    %v132 = vpop.f32.mrb[0].mxu0
    %133 = vmatprep.mubr.f32.mxu0 0.0
    %134 = vmatmul.mubr.f32.gmra.mrb[0].mxu0 %v42
    %v135 = vpop.f32.mrb[0].mxu0
    %v136 = vadd.f32 0.0, %v135
    %v137 = vpop.f32.mrb[0].mxu0
    %138 = vmatprep.mubr.f32.mxu0 0.0
    %139 = vmatmul.mubr.f32.gmra.mrb[0].mxu0 %v45
    %v140 = vpop.f32.mrb[0].mxu0
    %v141 = vadd.f32 0.0, %v140
    %v142 = vpop.f32.mrb[0].mxu0
    %143 = vmatprep.mubr.f32.mxu0 0.0
    %144 = vmatmul.mubr.f32.gmra.mrb[0].mxu0 %v48
    %v145 = vpop.f32.mrb[0].mxu0
    %v146 = vadd.f32 0.0, %v145
    %v147 = vpop.f32.mrb[0].mxu0
    %148 = vmatprep.mubr.f32.mxu0 0.0
    %149 = vmatmul.mubr.f32.gmra.mrb[0].mxu0 %v51
    %v150 = vpop.f32.mrb[0].mxu0
    %v151 = vadd.f32 0.0, %v150
    %v152 = vpop.f32.mrb[0].mxu0
    %153 = vmatprep.mubr.f32.mxu0 0.0
    %154 = vmatmul.mubr.f32.gmra.mrb[0].mxu0 %v54
    %v155 = vpop.f32.mrb[0].mxu0
    %v156 = vadd.f32 0.0, %v155
    %v157 = vpop.f32.mrb[0].mxu0
    %158 = vmatprep.mubr.f32.mxu0 0.0
    %159 = vmatmul.mubr.f32.gmra.mrb[0].mxu0 %v57
    %v160 = vpop.f32.mrb[0].mxu0
    %v161 = vadd.f32 0.0, %v160
    %v162 = vpop.f32.mrb[0].mxu0
    %163 = vdwg.mxu0
    %v164 = vld [vmem:[%s1] sm:$0xff]
    %v165 = vld [vmem:[%s3] sm:$0xff]
    %v166 = vld [vmem:[%s3 + $0x8] sm:$0xff]
    %v167 = vld [vmem:[%s3 + $0x10] sm:$0xff]
    %v168 = vld [vmem:[%s3 + $0x18] sm:$0xff]
    %v169 = vld [vmem:[%s3 + $0x20] sm:$0xff]
    %v170 = vld [vmem:[%s3 + $0x28] sm:$0xff]
    %v171 = vld [vmem:[%s3 + $0x30] sm:$0xff]
    %v172 = vld [vmem:[%s3 + $0x38] sm:$0xff]
    %v173 = vld [vmem:[%s3 + $0x40] sm:$0xff]
    %v174 = vld [vmem:[%s3 + $0x48] sm:$0xff]
    %v175 = vld [vmem:[%s3 + $0x50] sm:$0xff]
    %v176 = vld [vmem:[%s3 + $0x58] sm:$0xff]
    %v177 = vld [vmem:[%s3 + $0x60] sm:$0xff]
    %v178 = vld [vmem:[%s3 + $0x68] sm:$0xff]
    %v179 = vld [vmem:[%s3 + $0x70] sm:$0xff]
    %v180 = vld [vmem:[%s3 + $0x78] sm:$0xff]
    %181 = vmatprep.subr.mxu0 0.0
    %182 = vmatpush1.msra.mxu0 %v165
    %183 = vmatprep.subr.mxu0 0.0
    %184 = vmatpush1.msra.mxu0 %v166
    %185 = vmatprep.subr.mxu0 0.0
    %186 = vmatpush1.msra.mxu0 %v167
    %187 = vmatprep.subr.mxu0 0.0
    %188 = vmatpush1.msra.mxu0 %v168
    %189 = vmatprep.subr.mxu0 0.0
    %190 = vmatpush1.msra.mxu0 %v169
    %191 = vmatprep.subr.mxu0 0.0
    %192 = vmatpush1.msra.mxu0 %v170
    %193 = vmatprep.subr.mxu0 0.0
    %194 = vmatpush1.msra.mxu0 %v171
    %195 = vmatprep.subr.mxu0 0.0
    %196 = vmatpush1.msra.mxu0 %v172
    %197 = vmatprep.subr.mxu0 0.0
    %198 = vmatpush1.msra.mxu0 %v173
    %199 = vmatprep.subr.mxu0 0.0
    %200 = vmatpush1.msra.mxu0 %v174
    %201 = vmatprep.subr.mxu0 0.0
    %202 = vmatpush1.msra.mxu0 %v175
    %203 = vmatprep.subr.mxu0 0.0
    %204 = vmatpush1.msra.mxu0 %v176
    %205 = vmatprep.subr.mxu0 0.0
    %206 = vmatpush1.msra.mxu0 %v177
    %207 = vmatprep.subr.mxu0 0.0
    %208 = vmatpush1.msra.mxu0 %v178
    %209 = vmatprep.subr.mxu0 0.0
    %210 = vmatpush1.msra.mxu0 %v179
    %211 = vmatprep.subr.mxu0 0.0
    %212 = vmatpush1.msra.mxu0 %v180
    %213 = vmatprep.subr.mxu0 0.0
    %214 = vmatpush1.msra.mxu0 0.0
    %215 = vmatprep.subr.mxu0 0.0
    %216 = vmatpush1.msra.mxu0 0.0
    %217 = vmatprep.subr.mxu0 0.0
    %218 = vmatpush1.msra.mxu0 0.0
    %219 = vmatprep.subr.mxu0 0.0
    %220 = vmatpush1.msra.mxu0 0.0
    %221 = vmatprep.subr.mxu0 0.0
    %222 = vmatpush1.msra.mxu0 0.0
    %223 = vmatprep.subr.mxu0 0.0
    %224 = vmatpush1.msra.mxu0 0.0
    %225 = vmatprep.subr.mxu0 0.0
    %226 = vmatpush1.msra.mxu0 0.0
    %227 = vmatprep.subr.mxu0 0.0
    %228 = vmatpush1.msra.mxu0 0.0
    %229 = vmatprep.subr.mxu0 0.0
    %230 = vmatpush1.msra.mxu0 0.0
    %231 = vmatprep.subr.mxu0 0.0
    %232 = vmatpush1.msra.mxu0 0.0
    %233 = vmatprep.subr.mxu0 0.0
    %234 = vmatpush1.msra.mxu0 0.0
    %235 = vmatprep.subr.mxu0 0.0
    %236 = vmatpush1.msra.mxu0 0.0
    %237 = vmatprep.subr.mxu0 0.0
    %238 = vmatpush1.msra.mxu0 0.0
    %239 = vmatprep.subr.mxu0 0.0
    %240 = vmatpush1.msra.mxu0 0.0
    %241 = vmatprep.subr.mxu0 0.0
    %242 = vmatpush1.msra.mxu0 0.0
    %243 = vmatprep.subr.mxu0 0.0
    %244 = vmatpush1.msra.mxu0 0.0
    %245 = vmatprep.mubr.f32.mxu0 0.0
    %246 = vmatmul.mubr.f32.gmra.mrb[0].mxu0 %v164
    %v247 = vpop.f32.mrb[0].mxu0
    %v248 = vadd.f32 0.0, %v247
    %v249 = vpop.f32.mrb[0].mxu0
    %250 = vdwg.mxu0
    %v252 = vcombine.high %v248, %v248
    %v254 = vunpack.c.l.s4 1966171168
    %v255 = vunpack.c.0.s8 %v254
    %v256 = vlaneseq
    %v257 = vshrl.u32 %v256, 7
    %v258 = vsub.s32 %v255, %v257
    %v259 = vrot.slane %v248, %v258
    %v261 = vunpack.c.l.s4 1966171168
    %v262 = vunpack.c.0.s8 %v261
    %v263 = vlaneseq
    %v264 = vshrl.u32 %v263, 7
    %v265 = vsub.s32 %v262, %v264
    %v266 = vrot.slane %v252, %v265
    %v267 = vcombine.high %v259, %v259
    %v268 = vcombine.high %v266, %v266
    %v270 = vunpack.c.l.s4 1966171168
    %v271 = vunpack.c.0.s8 %v270
    %v272 = vlaneseq
    %v273 = vshrl.u32 %v272, 7
    %v274 = vsub.s32 %v271, %v273
    %v275 = vrot.slane %v259, %v274
    %v277 = vunpack.c.l.s4 1966171168
    %v278 = vunpack.c.0.s8 %v277
    %v279 = vlaneseq
    %v280 = vshrl.u32 %v279, 7
    %v281 = vsub.s32 %v278, %v280
    %v282 = vrot.slane %v266, %v281
    %v284 = vunpack.c.l.s4 1966171168
    %v285 = vunpack.c.0.s8 %v284
    %v286 = vlaneseq
    %v287 = vshrl.u32 %v286, 7
    %v288 = vsub.s32 %v285, %v287
    %v289 = vrot.slane %v267, %v288
    %v291 = vunpack.c.l.s4 1966171168
    %v292 = vunpack.c.0.s8 %v291
    %v293 = vlaneseq
    %v294 = vshrl.u32 %v293, 7
    %v295 = vsub.s32 %v292, %v294
    %v296 = vrot.slane %v268, %v295
    %v297 = vcombine.high %v275, %v275
    %v298 = vcombine.high %v282, %v282
    %v299 = vcombine.high %v289, %v289
    %v300 = vcombine.high %v296, %v296
    %v301 = vlaneseq
    %v302 = vshrl.u32 %v301, 7
    %v303 = vsub.s32 0, %v302
    %v304 = vrot.slane %v275, %v303
    %v305 = vlaneseq
    %v306 = vshrl.u32 %v305, 7
    %v307 = vsub.s32 0, %v306
    %v308 = vrot.slane %v289, %v307
    %v309 = vlaneseq
    %v310 = vshrl.u32 %v309, 7
    %v311 = vsub.s32 0, %v310
    %v312 = vrot.slane %v297, %v311
    %v313 = vlaneseq
    %v314 = vshrl.u32 %v313, 7
    %v315 = vsub.s32 0, %v314
    %v316 = vrot.slane %v299, %v315
    %v317 = vlaneseq
    %v318 = vshrl.u32 %v317, 7
    %v319 = vsub.s32 0, %v318
    %v320 = vrot.slane %v282, %v319
    %v321 = vlaneseq
    %v322 = vshrl.u32 %v321, 7
    %v323 = vsub.s32 0, %v322
    %v324 = vrot.slane %v296, %v323
    %v325 = vlaneseq
    %v326 = vshrl.u32 %v325, 7
    %v327 = vsub.s32 0, %v326
    %v328 = vrot.slane %v298, %v327
    %v329 = vlaneseq
    %v330 = vshrl.u32 %v329, 7
    %v331 = vsub.s32 0, %v330
    %v332 = vrot.slane %v300, %v331
    %v341 = vadd.f32 %v126, %v304
    %v342 = vadd.f32 %v131, %v308
    %v343 = vadd.f32 %v136, %v312
    %v344 = vadd.f32 %v141, %v316
    %v345 = vadd.f32 %v146, %v320
    %v346 = vadd.f32 %v151, %v324
    %v347 = vadd.f32 %v156, %v328
    %v348 = vadd.f32 %v161, %v332
    %v349 = vtanh.pop %v341
    %v350 = vtanh.pop %v342
    %v351 = vtanh.pop %v343
    %v352 = vtanh.pop %v344
    %v353 = vtanh.pop %v345
    %v354 = vtanh.pop %v346
    %v355 = vtanh.pop %v347
    %v356 = vtanh.pop %v348
    %v357 = vld [vmem:[%s4] sm:$0xff]
    %v358 = vld [vmem:[%s4 + $0x8] sm:$0xff]
    %v359 = vld [vmem:[%s4 + $0x10] sm:$0xff]
    %v360 = vld [vmem:[%s4 + $0x18] sm:$0xff]
    %v361 = vld [vmem:[%s4 + $0x20] sm:$0xff]
    %v362 = vld [vmem:[%s4 + $0x28] sm:$0xff]
    %v363 = vld [vmem:[%s4 + $0x30] sm:$0xff]
    %v364 = vld [vmem:[%s4 + $0x38] sm:$0xff]
    %v365 = vld [vmem:[%s4 + $0x40] sm:$0xff]
    %v366 = vld [vmem:[%s4 + $0x48] sm:$0xff]
    %v367 = vld [vmem:[%s4 + $0x50] sm:$0xff]
    %v368 = vld [vmem:[%s4 + $0x58] sm:$0xff]
    %v369 = vld [vmem:[%s4 + $0x60] sm:$0xff]
    %v370 = vld [vmem:[%s4 + $0x68] sm:$0xff]
    %v371 = vld [vmem:[%s4 + $0x70] sm:$0xff]
    %v372 = vld [vmem:[%s4 + $0x78] sm:$0xff]
    %373 = vmatprep.subr.mxu0 0.0
    %374 = vmatpush1.msra.mxu0 %v357
    %375 = vmatprep.subr.mxu0 0.0
    %376 = vmatpush1.msra.mxu0 %v358
    %377 = vmatprep.subr.mxu0 0.0
    %378 = vmatpush1.msra.mxu0 %v359
    %379 = vmatprep.subr.mxu0 0.0
    %380 = vmatpush1.msra.mxu0 %v360
    %381 = vmatprep.subr.mxu0 0.0
    %382 = vmatpush1.msra.mxu0 %v361
    %383 = vmatprep.subr.mxu0 0.0
    %384 = vmatpush1.msra.mxu0 %v362
    %385 = vmatprep.subr.mxu0 0.0
    %386 = vmatpush1.msra.mxu0 %v363
    %387 = vmatprep.subr.mxu0 0.0
    %388 = vmatpush1.msra.mxu0 %v364
    %389 = vmatprep.subr.mxu0 0.0
    %390 = vmatpush1.msra.mxu0 %v365
    %391 = vmatprep.subr.mxu0 0.0
    %392 = vmatpush1.msra.mxu0 %v366
    %393 = vmatprep.subr.mxu0 0.0
    %394 = vmatpush1.msra.mxu0 %v367
    %395 = vmatprep.subr.mxu0 0.0
    %396 = vmatpush1.msra.mxu0 %v368
    %397 = vmatprep.subr.mxu0 0.0
    %398 = vmatpush1.msra.mxu0 %v369
    %399 = vmatprep.subr.mxu0 0.0
    %400 = vmatpush1.msra.mxu0 %v370
    %401 = vmatprep.subr.mxu0 0.0
    %402 = vmatpush1.msra.mxu0 %v371
    %403 = vmatprep.subr.mxu0 0.0
    %404 = vmatpush1.msra.mxu0 %v372
    %405 = vmatprep.subr.mxu0 0.0
    %406 = vmatpush1.msra.mxu0 0.0
    %407 = vmatprep.subr.mxu0 0.0
    %408 = vmatpush1.msra.mxu0 0.0
    %409 = vmatprep.subr.mxu0 0.0
    %410 = vmatpush1.msra.mxu0 0.0
    %411 = vmatprep.subr.mxu0 0.0
    %412 = vmatpush1.msra.mxu0 0.0
    %413 = vmatprep.subr.mxu0 0.0
    %414 = vmatpush1.msra.mxu0 0.0
    %415 = vmatprep.subr.mxu0 0.0
    %416 = vmatpush1.msra.mxu0 0.0
    %417 = vmatprep.subr.mxu0 0.0
    %418 = vmatpush1.msra.mxu0 0.0
    %419 = vmatprep.subr.mxu0 0.0
    %420 = vmatpush1.msra.mxu0 0.0
    %421 = vmatprep.subr.mxu0 0.0
    %422 = vmatpush1.msra.mxu0 0.0
    %423 = vmatprep.subr.mxu0 0.0
    %424 = vmatpush1.msra.mxu0 0.0
    %425 = vmatprep.subr.mxu0 0.0
    %426 = vmatpush1.msra.mxu0 0.0
    %427 = vmatprep.subr.mxu0 0.0
    %428 = vmatpush1.msra.mxu0 0.0
    %429 = vmatprep.subr.mxu0 0.0
    %430 = vmatpush1.msra.mxu0 0.0
    %431 = vmatprep.subr.mxu0 0.0
    %432 = vmatpush1.msra.mxu0 0.0
    %433 = vmatprep.subr.mxu0 0.0
    %434 = vmatpush1.msra.mxu0 0.0
    %435 = vmatprep.subr.mxu0 0.0
    %436 = vmatpush1.msra.mxu0 0.0
    %437 = vmatprep.mubr.f32.mxu0 0.0
    %438 = vmatmul.mubr.f32.gmra.mrb[0].mxu0 %v349
    %v439 = vpop.f32.mrb[0].mxu0
    %v440 = vadd.f32 0.0, %v439
    %v441 = vpop.f32.mrb[0].mxu0
    %442 = vmatprep.mubr.f32.mxu0 0.0
    %443 = vmatmul.mubr.f32.gmra.mrb[0].mxu0 %v350
    %v444 = vpop.f32.mrb[0].mxu0
    %v445 = vadd.f32 0.0, %v444
    %v446 = vpop.f32.mrb[0].mxu0
    %447 = vmatprep.mubr.f32.mxu0 0.0
    %448 = vmatmul.mubr.f32.gmra.mrb[0].mxu0 %v351
    %v449 = vpop.f32.mrb[0].mxu0
    %v450 = vadd.f32 0.0, %v449
    %v451 = vpop.f32.mrb[0].mxu0
    %452 = vmatprep.mubr.f32.mxu0 0.0
    %453 = vmatmul.mubr.f32.gmra.mrb[0].mxu0 %v352
    %v454 = vpop.f32.mrb[0].mxu0
    %v455 = vadd.f32 0.0, %v454
    %v456 = vpop.f32.mrb[0].mxu0
    %457 = vmatprep.mubr.f32.mxu0 0.0
    %458 = vmatmul.mubr.f32.gmra.mrb[0].mxu0 %v353
    %v459 = vpop.f32.mrb[0].mxu0
    %v460 = vadd.f32 0.0, %v459
    %v461 = vpop.f32.mrb[0].mxu0
    %462 = vmatprep.mubr.f32.mxu0 0.0
    %463 = vmatmul.mubr.f32.gmra.mrb[0].mxu0 %v354
    %v464 = vpop.f32.mrb[0].mxu0
    %v465 = vadd.f32 0.0, %v464
    %v466 = vpop.f32.mrb[0].mxu0
    %467 = vmatprep.mubr.f32.mxu0 0.0
    %468 = vmatmul.mubr.f32.gmra.mrb[0].mxu0 %v355
    %v469 = vpop.f32.mrb[0].mxu0
    %v470 = vadd.f32 0.0, %v469
    %v471 = vpop.f32.mrb[0].mxu0
    %472 = vmatprep.mubr.f32.mxu0 0.0
    %473 = vmatmul.mubr.f32.gmra.mrb[0].mxu0 %v356
    %v474 = vpop.f32.mrb[0].mxu0
    %v475 = vadd.f32 0.0, %v474
    %v476 = vpop.f32.mrb[0].mxu0
    %477 = vdwg.mxu0
    %vm478 = vcmask 64512
    %v479 = vsel %vm478, %v440, -inf
    %480 = vmax.xlane.f32.xlu0 %v479
    %v481 = vpop.xlane.xlu0 %480
    %v482 = vsel %vm478, %v445, -inf
    %483 = vmax.xlane.f32.xlu0 %v482
    %v484 = vpop.xlane.xlu0 %483
    %v485 = vsel %vm478, %v450, -inf
    %486 = vmax.xlane.f32.xlu0 %v485
    %v487 = vpop.xlane.xlu0 %486
    %v488 = vsel %vm478, %v455, -inf
    %489 = vmax.xlane.f32.xlu0 %v488
    %v490 = vpop.xlane.xlu0 %489
    %v491 = vsel %vm478, %v460, -inf
    %492 = vmax.xlane.f32.xlu0 %v491
    %v493 = vpop.xlane.xlu0 %492
    %v494 = vsel %vm478, %v465, -inf
    %495 = vmax.xlane.f32.xlu0 %v494
    %v496 = vpop.xlane.xlu0 %495
    %v497 = vsel %vm478, %v470, -inf
    %498 = vmax.xlane.f32.xlu0 %v497
    %v499 = vpop.xlane.xlu0 %498
    %v500 = vsel %vm478, %v475, -inf
    %501 = vmax.xlane.f32.xlu0 %v500
    %v502 = vpop.xlane.xlu0 %501
    %v503 = vsub.f32 %v440, %v481
    %v504 = vsub.f32 %v445, %v484
    %v505 = vsub.f32 %v450, %v487
    %v506 = vsub.f32 %v455, %v490
    %v507 = vsub.f32 %v460, %v493
    %v508 = vsub.f32 %v465, %v496
    %v509 = vsub.f32 %v470, %v499
    %v510 = vsub.f32 %v475, %v502
    %v511 = vmul.f32 %v503, 1.442695
    %v512 = vpow.pop %v511
    %v513 = vmul.f32 %v504, 1.442695
    %v514 = vpow.pop %v513
    %v515 = vmul.f32 %v505, 1.442695
    %v516 = vpow.pop %v515
    %v517 = vmul.f32 %v506, 1.442695
    %v518 = vpow.pop %v517
    %v519 = vmul.f32 %v507, 1.442695
    %v520 = vpow.pop %v519
    %v521 = vmul.f32 %v508, 1.442695
    %v522 = vpow.pop %v521
    %v523 = vmul.f32 %v509, 1.442695
    %v524 = vpow.pop %v523
    %v525 = vmul.f32 %v510, 1.442695
    %v526 = vpow.pop %v525
    %v527 = vsel %vm478, %v512, 0.0
    %528 = vadd.xlane.f32.xlu0 %v527
    %v529 = vpop.xlane.xlu0 %528
    %v530 = vsel %vm478, %v514, 0.0
    %531 = vadd.xlane.f32.xlu0 %v530
    %v532 = vpop.xlane.xlu0 %531
    %v533 = vsel %vm478, %v516, 0.0
    %534 = vadd.xlane.f32.xlu0 %v533
    %v535 = vpop.xlane.xlu0 %534
    %v536 = vsel %vm478, %v518, 0.0
    %537 = vadd.xlane.f32.xlu0 %v536
    %v538 = vpop.xlane.xlu0 %537
    %v539 = vsel %vm478, %v520, 0.0
    %540 = vadd.xlane.f32.xlu0 %v539
    %v541 = vpop.xlane.xlu0 %540
    %v542 = vsel %vm478, %v522, 0.0
    %543 = vadd.xlane.f32.xlu0 %v542
    %v544 = vpop.xlane.xlu0 %543
    %v545 = vsel %vm478, %v524, 0.0
    %546 = vadd.xlane.f32.xlu0 %v545
    %v547 = vpop.xlane.xlu0 %546
    %v548 = vsel %vm478, %v526, 0.0
    %549 = vadd.xlane.f32.xlu0 %v548
    %v550 = vpop.xlane.xlu0 %549
    %v551 = vrcp.pop %v529
    %v552 = vmul.f32 %v512, %v551
    %v553 = vrcp.pop %v532
    %v554 = vmul.f32 %v514, %v553
    %v555 = vrcp.pop %v535
    %v556 = vmul.f32 %v516, %v555
    %v557 = vrcp.pop %v538
    %v558 = vmul.f32 %v518, %v557
    %v559 = vrcp.pop %v541
    %v560 = vmul.f32 %v520, %v559
    %v561 = vrcp.pop %v544
    %v562 = vmul.f32 %v522, %v561
    %v563 = vrcp.pop %v547
    %v564 = vmul.f32 %v524, %v563
    %v565 = vrcp.pop %v550
    %v566 = vmul.f32 %v526, %v565
    %v567 = vsel %vm478, %v552, 0.0
    %568 = vadd.xlane.f32.xlu0 %v567
    %v569 = vpop.xlane.xlu0 %568
    %v570 = vsel %vm478, %v554, 0.0
    %571 = vadd.xlane.f32.xlu0 %v570
    %v572 = vpop.xlane.xlu0 %571
    %v573 = vsel %vm478, %v556, 0.0
    %574 = vadd.xlane.f32.xlu0 %v573
    %v575 = vpop.xlane.xlu0 %574
    %v576 = vsel %vm478, %v558, 0.0
    %577 = vadd.xlane.f32.xlu0 %v576
    %v578 = vpop.xlane.xlu0 %577
    %v579 = vsel %vm478, %v560, 0.0
    %580 = vadd.xlane.f32.xlu0 %v579
    %v581 = vpop.xlane.xlu0 %580
    %v582 = vsel %vm478, %v562, 0.0
    %583 = vadd.xlane.f32.xlu0 %v582
    %v584 = vpop.xlane.xlu0 %583
    %v585 = vsel %vm478, %v564, 0.0
    %586 = vadd.xlane.f32.xlu0 %v585
    %v587 = vpop.xlane.xlu0 %586
    %v588 = vsel %vm478, %v566, 0.0
    %589 = vadd.xlane.f32.xlu0 %v588
    %v590 = vpop.xlane.xlu0 %589
    %v591 = vld [vmem:[%s5] sm:$0xff]
    %v600 = vlaneseq
    %v601 = vand.u32 %v600, 127
    %v602 = vlaneseq
    %v603 = vshrl.u32 %v602, 7
    %v604 = vsub.s32 %v601, %v603
    %v605 = vrot.slane %v569, %v604
    %v606 = vlaneseq
    %v607 = vshrl.u32 %v606, 7
    %v608 = vsub.s32 %v601, %v607
    %v609 = vrot.slane %v572, %v608
    %v610 = vlaneseq
    %v611 = vshrl.u32 %v610, 7
    %v612 = vsub.s32 %v601, %v611
    %v613 = vrot.slane %v575, %v612
    %v614 = vlaneseq
    %v615 = vshrl.u32 %v614, 7
    %v616 = vsub.s32 %v601, %v615
    %v617 = vrot.slane %v578, %v616
    %v618 = vlaneseq
    %v619 = vshrl.u32 %v618, 7
    %v620 = vsub.s32 %v601, %v619
    %v621 = vrot.slane %v581, %v620
    %v622 = vlaneseq
    %v623 = vshrl.u32 %v622, 7
    %v624 = vsub.s32 %v601, %v623
    %v625 = vrot.slane %v584, %v624
    %v626 = vlaneseq
    %v627 = vshrl.u32 %v626, 7
    %v628 = vsub.s32 %v601, %v627
    %v629 = vrot.slane %v587, %v628
    %v630 = vlaneseq
    %v631 = vshrl.u32 %v630, 7
    %v632 = vsub.s32 %v601, %v631
    %v633 = vrot.slane %v590, %v632
    %vm634 = vcmask 1041409
    %v635 = vsel %vm634, %v609, %v605
    %vm636 = vcmask 1042434
    %v637 = vsel %vm636, %v613, %v635
    %vm638 = vcmask 1043459
    %v639 = vsel %vm638, %v617, %v637
    %vm640 = vcmask 1044484
    %v641 = vsel %vm640, %v621, %v639
    %vm642 = vcmask 1045509
    %v643 = vsel %vm642, %v625, %v641
    %vm644 = vcmask 1046534
    %v645 = vsel %vm644, %v629, %v643
    %vm646 = vcmask 1047559
    %v647 = vsel %vm646, %v633, %v645
    %v648 = vsel %vm478, %v647, 0
    %650 = vmatprep.subr.mxu0 0.0
    %651 = vmatpush1.msra.mxu0 %v591
    %652 = vmatprep.subr.mxu0 0.0
    %653 = vmatpush1.msra.mxu0 0.0
    %654 = vmatprep.subr.mxu0 0.0
    %655 = vmatpush1.msra.mxu0 0.0
    %656 = vmatprep.subr.mxu0 0.0
    %657 = vmatpush1.msra.mxu0 0.0
    %658 = vmatprep.subr.mxu0 0.0
    %659 = vmatpush1.msra.mxu0 0.0
    %660 = vmatprep.subr.mxu0 0.0
    %661 = vmatpush1.msra.mxu0 0.0
    %662 = vmatprep.subr.mxu0 0.0
    %663 = vmatpush1.msra.mxu0 0.0
    %664 = vmatprep.subr.mxu0 0.0
    %665 = vmatpush1.msra.mxu0 0.0
    %666 = vmatprep.subr.mxu0 0.0
    %667 = vmatpush1.msra.mxu0 0.0
    %668 = vmatprep.subr.mxu0 0.0
    %669 = vmatpush1.msra.mxu0 0.0
    %670 = vmatprep.subr.mxu0 0.0
    %671 = vmatpush1.msra.mxu0 0.0
    %672 = vmatprep.subr.mxu0 0.0
    %673 = vmatpush1.msra.mxu0 0.0
    %674 = vmatprep.subr.mxu0 0.0
    %675 = vmatpush1.msra.mxu0 0.0
    %676 = vmatprep.subr.mxu0 0.0
    %677 = vmatpush1.msra.mxu0 0.0
    %678 = vmatprep.subr.mxu0 0.0
    %679 = vmatpush1.msra.mxu0 0.0
    %680 = vmatprep.subr.mxu0 0.0
    %681 = vmatpush1.msra.mxu0 0.0
    %682 = vmatprep.subr.mxu0 0.0
    %683 = vmatpush1.msra.mxu0 0.0
    %684 = vmatprep.subr.mxu0 0.0
    %685 = vmatpush1.msra.mxu0 0.0
    %686 = vmatprep.subr.mxu0 0.0
    %687 = vmatpush1.msra.mxu0 0.0
    %688 = vmatprep.subr.mxu0 0.0
    %689 = vmatpush1.msra.mxu0 0.0
    %690 = vmatprep.subr.mxu0 0.0
    %691 = vmatpush1.msra.mxu0 0.0
    %692 = vmatprep.subr.mxu0 0.0
    %693 = vmatpush1.msra.mxu0 0.0
    %694 = vmatprep.subr.mxu0 0.0
    %695 = vmatpush1.msra.mxu0 0.0
    %696 = vmatprep.subr.mxu0 0.0
    %697 = vmatpush1.msra.mxu0 0.0
    %698 = vmatprep.subr.mxu0 0.0
    %699 = vmatpush1.msra.mxu0 0.0
    %700 = vmatprep.subr.mxu0 0.0
    %701 = vmatpush1.msra.mxu0 0.0
    %702 = vmatprep.subr.mxu0 0.0
    %703 = vmatpush1.msra.mxu0 0.0
    %704 = vmatprep.subr.mxu0 0.0
    %705 = vmatpush1.msra.mxu0 0.0
    %706 = vmatprep.subr.mxu0 0.0
    %707 = vmatpush1.msra.mxu0 0.0
    %708 = vmatprep.subr.mxu0 0.0
    %709 = vmatpush1.msra.mxu0 0.0
    %710 = vmatprep.subr.mxu0 0.0
    %711 = vmatpush1.msra.mxu0 0.0
    %712 = vmatprep.subr.mxu0 0.0
    %713 = vmatpush1.msra.mxu0 0.0
    %714 = vmatprep.mubr.f32.mxu0 0.0
    %715 = vmatmul.mubr.f32.gmra.mrb[0].mxu0 %v648
    %v716 = vpop.f32.mrb[0].mxu0
    %v717 = vadd.f32 0.0, %v716
    %v718 = vpop.f32.mrb[0].mxu0
    %719 = vdwg.mxu0
    %v720 = vmul.f32 %v164, %v717
    %721 = vst [vmem:[#allocation2] sm:$0xff] %v720
    // Predicated region
    $region26: #{tpu_custom_call.1} parent=1 // pred_check
      _
    $region27: #{tpu_custom_call.1} parent=1 // pred_check_branch
      %723 = sbr.rel (0) target = $region29
    $region28: #{tpu_custom_call.1} parent=1 // pred_region
      %s725 = ssub.s32 128, 128
      %726 = vsyncadd [#allocation3], %s725
      %s728 = sshll.u32 [#allocation2], 4
      %s729 = int_to_ptr.vmem [resolvable:$true] %s728
      %731 = dma.vmem_to_hbm [thread:$0]  %s729, 128, %s6, [#allocation3]
    $region29: #{tpu_custom_call.1} parent=1 // pred_fallthru
      _
    // Predicated region
    $region30: #{tpu_custom_call.1} parent=1 // pred_check
      _
    $region31: #{tpu_custom_call.1} parent=1 // pred_check_branch
      %733 = sbr.rel (0) target = $region33
    $region32: #{tpu_custom_call.1} parent=1 // pred_region
      %734 = dma.done [#allocation3], 128
    $region33: #{tpu_custom_call.1} parent=1 // pred_fallthru
      _
    %735 = vsyncpa [#allocation3], 1

</llo_original>
